<compile_context>
chip_gen: v7x
topology: tpu7x:2x2x1
jax: 0.10.0
libtpu: 0.0.40
codegen_flags: <defaults>
</compile_context>

<pallas_src>
import functools

import jax
import jax.numpy as jnp
from jax.experimental import pallas as pl
from jax.experimental.pallas import tpu as pltpu

_LANE = 128
_H1, _H2, _H3 = 64, 32, 32  # hidden widths of the PyTorch module


def _round_up(x, m):
    return (x + m - 1) // m * m


def _default_transcendental_dtype():
    """bf16 EUP exists on v6e/v7x; keep f32 transcendentals on v5e and older."""
    try:
        kind = jax.devices()[0].device_kind.lower()
    except Exception:
        return jnp.float32
    if any(tag in kind for tag in ("v6", "v7", "tpu7", "7x", "trillium", "ironwood")):
        return jnp.bfloat16
    return jnp.float32


def _choose_tile_m(batch, tile_m, min_steps=4):
    """Rows per grid step.

    Big tiles amortize the ~0.35us fixed per-step pipeline overhead; at the
    same time keep >= `min_steps` grid points (when the batch allows) so the
    "parallel" grid axis can be sharded across v7x's two TensorCores.
    """
    tm = _round_up(max(1, -(-batch // min_steps)), 16)   # multiple of 16: bf16-out safe
    tm = max(16, min(tm, tile_m))
    if tm >= batch:
        tm = batch          # single full-batch block (block == full dims, always legal)
    return tm


# ----------------------------------------------------------------------------
# Kernel
# ----------------------------------------------------------------------------
def _policy_kernel(x_ref, w_ref, b_ref, o_ref, *, act_dtype):
    cd = w_ref.dtype                                   # matmul input dtype (bf16)
    in_pad = w_ref.shape[0] - 3 * _LANE                # rows of layer-1 weights in slab

    # f32 HBM read, cast to bf16 in-kernel (no wrapper pad/cast pass).
    x = x_ref[...].astype(cd)                          # [TM, in_pad]

    # Static slices into the packed, 128-lane-padded weight slab (free).
    w1 = w_ref[0:in_pad, :]                            # [in_pad, 128]
    w2 = w_ref[in_pad:in_pad + _LANE, :]               # [128, 128]
    w3 = w_ref[in_pad + _LANE:in_pad + 2 * _LANE, :]   # [128, 128]
    w4 = w_ref[in_pad + 2 * _LANE:in_pad + 3 * _LANE, :]

    b1 = b_ref[0:1, :]                                 # [1, 128] f32 (zero-padded)
    b2 = b_ref[1:2, :]
    b3 = b_ref[2:3, :]
    b4 = b_ref[3:4, :]

    # layer1 + tanh (transcendental in act_dtype: bf16 on v6e/v7x, f32 on v5e)
    z1 = jnp.dot(x, w1, preferred_element_type=jnp.float32) + b1
    a1 = jnp.tanh(z1.astype(act_dtype)).astype(cd)
    # layer2 + relu
    z2 = jnp.dot(a1, w2, preferred_element_type=jnp.float32) + b2
    a2 = jnp.maximum(z2, 0.0).astype(cd)
    # layer3 + relu
    z3 = jnp.dot(a2, w3, preferred_element_type=jnp.float32) + b3
    a3 = jnp.maximum(z3, 0.0).astype(cd)
    # layer4 + sigmoid via tanh identity: sigmoid(z) = 0.5 * tanh(0.5*z) + 0.5
    z4 = jnp.dot(a3, w4, preferred_element_type=jnp.float32) + b4
    t4 = jnp.tanh((0.5 * z4).astype(act_dtype)).astype(jnp.float32)
    o_ref[...] = (0.5 * t4 + 0.5).astype(o_ref.dtype)  # lane-dense bf16 store


# ----------------------------------------------------------------------------
# Parameter packing: 9 operands -> 2 padded slabs (3 DMAs per call)
# ----------------------------------------------------------------------------
def pack_params(params, *, compute_dtype=jnp.bfloat16):
    in_features = params["w1"].shape[0]
    in_pad = _round_up(in_features, 32)   # keeps slab offsets tile-aligned (bf16/f32)

    def pad_w(w, rows):
        out = jnp.zeros((rows, _LANE), jnp.float32)
        return out.at[:w.shape[0], :w.shape[1]].set(w)

    w_slab = jnp.concatenate(
        [pad_w(params["w1"], in_pad),
         pad_w(params["w2"], _LANE),
         pad_w(params["w3"], _LANE),
         pad_w(params["w4"], _LANE)],
        axis=0,
    ).astype(compute_dtype)                           # [in_pad + 384, 128]

    b_slab = jnp.zeros((8, _LANE), jnp.float32)       # biases stay f32
    for i in range(4):
        b = params[f"b{i + 1}"].reshape(-1)
        b_slab = b_slab.at[i, :b.shape[0]].set(b)
    return w_slab, b_slab


# ----------------------------------------------------------------------------
# Forward wrapper
# ----------------------------------------------------------------------------
@functools.partial(
    jax.jit,
    static_argnames=("output_size", "tile_m", "act_dtype", "single_buffer_params"))
def _policy_forward_packed(x, w_slab, b_slab, *, output_size, tile_m,
                           act_dtype, single_buffer_params):
    B, in_features = x.shape
    in_pad = w_slab.shape[0] - 3 * _LANE

    if in_features != in_pad:
        # Rare fallback: pad the feature axis only (stays f32; cast is in-kernel).
        x = jnp.pad(x, ((0, 0), (0, in_pad - in_features)))

    tm = _choose_tile_m(B, tile_m)
    grid = (pl.cdiv(B, tm),)          # ragged last block handled by Pallas masking

    param_kwargs = {}
    if single_buffer_params:
        # Weight/bias slabs have a constant index_map -> resident for the whole
        # call; single-buffering saves VMEM + a redundant DMA check per step.
        param_kwargs = dict(pipeline_mode=pl.Buffered(1))

    kernel = functools.partial(_policy_kernel, act_dtype=act_dtype)

    out = pl.pallas_call(
        kernel,
        out_shape=jax.ShapeDtypeStruct((B, _LANE), jnp.bfloat16),   # bf16 halves write
        grid=grid,
        in_specs=[
            pl.BlockSpec((tm, in_pad), lambda i: (i, 0)),                    # x tile (f32)
            pl.BlockSpec((w_slab.shape[0], _LANE), lambda i: (0, 0),
                         **param_kwargs),                                    # weights
            pl.BlockSpec((8, _LANE), lambda i: (0, 0), **param_kwargs),      # biases
        ],
        out_specs=pl.BlockSpec((tm, _LANE), lambda i: (i, 0)),               # lane-dense
        compiler_params=pltpu.CompilerParams(
            dimension_semantics=("parallel",)),                              # 2 TCs on v7x
    )(x, w_slab, b_slab)

    # Narrow column slice + f32 cast (reads bf16 [B,128], writes f32 [B,out]).
    return out[:, :output_size].astype(jnp.float32)


def policy_network_forward(x, params, *, tile_m=4096, act_dtype=None):
    """x: [B, input_size] f32; params: dict of w{i} [in,out] / b{i} [1,out]."""
    w_slab, b_slab = pack_params(params)
    output_size = params["w4"].shape[1]
    if act_dtype is None:
        act_dtype = _default_transcendental_dtype()
    common = dict(output_size=output_size, tile_m=tile_m, act_dtype=act_dtype)
    try:
        return _policy_forward_packed(x, w_slab, b_slab,
                                      single_buffer_params=True, **common)
    except Exception:
        # pipeline_mode=pl.Buffered(1) is an optional micro-opt; fall back to
        # default double-buffered parameter specs if this build rejects it.
        return _policy_forward_packed(x, w_slab, b_slab,
                                      single_buffer_params=False, **common)


# ----------------------------------------------------------------------------
# Init (mimics nn.Linear default uniform +-1/sqrt(fan_in)); weights stored [in,out]
# ----------------------------------------------------------------------------
def init_params(key, input_size, board_size=5):
    output_size = board_size * board_size + 1
    dims = [(input_size, _H1), (_H1, _H2), (_H2, _H3), (_H3, output_size)]
    params = {}
    for i, (fan_in, fan_out) in enumerate(dims, start=1):
        key, kw, kb = jax.random.split(key, 3)
        bound = 1.0 / jnp.sqrt(jnp.float32(fan_in))
        params[f"w{i}"] = jax.random.uniform(
            kw, (fan_in, fan_out), jnp.float32, -bound, bound)
        params[f"b{i}"] = jax.random.uniform(
            kb, (1, fan_out), jnp.float32, -bound, bound)
    return params


def reference_forward(x, params, compute_dtype=jnp.float32):
    """Pure-JAX reference. compute_dtype controls matmul input precision so the
    bf16 kernel can be compared against numerically-matched math."""
    def dot(a, w):
        return jnp.dot(a.astype(compute_dtype), w.astype(compute_dtype),
                       preferred_element_type=jnp.float32)
    a1 = jnp.tanh(dot(x, params["w1"]) + params["b1"])
    a2 = jnp.maximum(dot(a1, params["w2"]) + params["b2"], 0.0)
    a3 = jnp.maximum(dot(a2, params["w3"]) + params["b3"], 0.0)
    z4 = dot(a3, params["w4"]) + params["b4"]
    return jax.nn.sigmoid(z4)


if __name__ == "__main__":
    key = jax.random.PRNGKey(0)
    input_size = 32
    board_size = 5
    output_size = board_size * board_size + 1

    kx, kp, kx2 = jax.random.split(key, 3)
    params = init_params(kp, input_size, board_size)

    # Small batch (original toy use-case): single full-batch block, grid of 1.
    x_small = jax.random.normal(kx, (8, input_size), jnp.float32)
    out_small = jax.block_until_ready(policy_network_forward(x_small, params))
    assert out_small.shape == (8, output_size)

    # Awkward batch exercising the tiled "parallel" grid (4 steps, ragged last block).
    x_big = jax.random.normal(kx2, (1000, input_size), jnp.float32)
    out_big = jax.block_until_ready(policy_network_forward(x_big, params))
    assert out_big.shape == (1000, output_size)

    # Correctness: vs precision-matched (bf16-matmul) reference, and looser vs
    # pure-f32 reference (bf16 matmuls + bf16 output quantization).
    for x_in, out in ((x_small, out_small), (x_big, out_big)):
        ref_m = reference_forward(x_in, params, compute_dtype=jnp.bfloat16)
        ref_f = reference_forward(x_in, params, compute_dtype=jnp.float32)
        assert jnp.allclose(out, ref_m, atol=1e-2, rtol=1e-2), "mismatch vs matched ref"
        assert jnp.allclose(out, ref_f, atol=2.5e-2, rtol=2.5e-2), "mismatch vs f32 ref"
        assert bool(jnp.all((out >= 0.0) & (out <= 1.0)))

    print("KERNEL_OK")
</pallas_src>

<mosaic_0001>
module attributes {stable_mosaic.version = 11 : i64} {
  func.func @_policy_kernel(%arg0: i32, %arg1: memref<8x32xf32, #tpu.memory_space<vmem>>, %arg2: memref<416x128xbf16, #tpu.memory_space<vmem>>, %arg3: memref<8x128xf32, #tpu.memory_space<vmem>>, %arg4: memref<8x128xbf16, #tpu.memory_space<vmem>>) attributes {dimension_semantics = [#tpu.dimension_semantics<parallel>], iteration_bounds = array<i64: 1>, scalar_prefetch = 0 : i64, scratch_operands = 0 : i64, tpu.core_type = #tpu.core_type<tc>, window_params = [{transform_indices = @transform_0, window_bounds = array<i64: 8, 32>}, {pipeline_mode = #tpu.pipeline_mode<synchronous>, transform_indices = @transform_1, window_bounds = array<i64: 416, 128>}, {pipeline_mode = #tpu.pipeline_mode<synchronous>, transform_indices = @transform_2, window_bounds = array<i64: 8, 128>}, {transform_indices = @transform_3, window_bounds = array<i64: 8, 128>}]} {
    %c0 = arith.constant 0 : index
    %c0_0 = arith.constant 0 : index
    %0 = vector.load %arg1[%c0, %c0_0] : memref<8x32xf32, #tpu.memory_space<vmem>>, vector<8x32xf32>
    %1 = arith.truncf %0 : vector<8x32xf32> to vector<8x32xbf16>
    %c0_1 = arith.constant 0 : index
    %c0_2 = arith.constant 0 : index
    %2 = vector.load %arg2[%c0_1, %c0_2] : memref<416x128xbf16, #tpu.memory_space<vmem>>, vector<32x128xbf16>
    %c32 = arith.constant 32 : index
    %c0_3 = arith.constant 0 : index
    %3 = vector.load %arg2[%c32, %c0_3] : memref<416x128xbf16, #tpu.memory_space<vmem>>, vector<128x128xbf16>
    %c160 = arith.constant 160 : index
    %c0_4 = arith.constant 0 : index
    %4 = vector.load %arg2[%c160, %c0_4] : memref<416x128xbf16, #tpu.memory_space<vmem>>, vector<128x128xbf16>
    %c288 = arith.constant 288 : index
    %c0_5 = arith.constant 0 : index
    %5 = vector.load %arg2[%c288, %c0_5] : memref<416x128xbf16, #tpu.memory_space<vmem>>, vector<128x128xbf16>
    %c0_6 = arith.constant 0 : index
    %c0_7 = arith.constant 0 : index
    %6 = vector.load %arg3[%c0_6, %c0_7] : memref<8x128xf32, #tpu.memory_space<vmem>>, vector<1x128xf32>
    %c1 = arith.constant 1 : index
    %c0_8 = arith.constant 0 : index
    %7 = vector.load %arg3[%c1, %c0_8] : memref<8x128xf32, #tpu.memory_space<vmem>>, vector<1x128xf32>
    %c2 = arith.constant 2 : index
    %c0_9 = arith.constant 0 : index
    %8 = vector.load %arg3[%c2, %c0_9] : memref<8x128xf32, #tpu.memory_space<vmem>>, vector<1x128xf32>
    %c3 = arith.constant 3 : index
    %c0_10 = arith.constant 0 : index
    %9 = vector.load %arg3[%c3, %c0_10] : memref<8x128xf32, #tpu.memory_space<vmem>>, vector<1x128xf32>
    %cst = arith.constant dense<0.000000e+00> : vector<8x128xf32>
    %10 = tpu.matmul %1, %2, %cst {dimension_numbers = #tpu.dot_dimension_numbers<[1], [0], [0], [1], [0, 0, 1, 1], [], []>} : vector<8x32xbf16>, vector<32x128xbf16>, vector<8x128xf32> -> vector<8x128xf32>
    %11 = vector.broadcast %6 : vector<1x128xf32> to vector<8x128xf32>
    %12 = arith.addf %10, %11 : vector<8x128xf32>
    %13 = math.tanh %12 : vector<8x128xf32>
    %14 = arith.truncf %13 : vector<8x128xf32> to vector<8x128xbf16>
    %cst_11 = arith.constant dense<0.000000e+00> : vector<8x128xf32>
    %15 = tpu.matmul %14, %3, %cst_11 {dimension_numbers = #tpu.dot_dimension_numbers<[1], [0], [0], [1], [0, 0, 1, 1], [], []>} : vector<8x128xbf16>, vector<128x128xbf16>, vector<8x128xf32> -> vector<8x128xf32>
    %16 = vector.broadcast %7 : vector<1x128xf32> to vector<8x128xf32>
    %17 = arith.addf %15, %16 : vector<8x128xf32>
    %cst_12 = arith.constant 0.000000e+00 : f32
    %18 = vector.broadcast %cst_12 : f32 to vector<8x128xf32>
    %19 = arith.maximumf %17, %18 : vector<8x128xf32>
    %20 = arith.truncf %19 : vector<8x128xf32> to vector<8x128xbf16>
    %cst_13 = arith.constant dense<0.000000e+00> : vector<8x128xf32>
    %21 = tpu.matmul %20, %4, %cst_13 {dimension_numbers = #tpu.dot_dimension_numbers<[1], [0], [0], [1], [0, 0, 1, 1], [], []>} : vector<8x128xbf16>, vector<128x128xbf16>, vector<8x128xf32> -> vector<8x128xf32>
    %22 = vector.broadcast %8 : vector<1x128xf32> to vector<8x128xf32>
    %23 = arith.addf %21, %22 : vector<8x128xf32>
    %cst_14 = arith.constant 0.000000e+00 : f32
    %24 = vector.broadcast %cst_14 : f32 to vector<8x128xf32>
    %25 = arith.maximumf %23, %24 : vector<8x128xf32>
    %26 = arith.truncf %25 : vector<8x128xf32> to vector<8x128xbf16>
    %cst_15 = arith.constant dense<0.000000e+00> : vector<8x128xf32>
    %27 = tpu.matmul %26, %5, %cst_15 {dimension_numbers = #tpu.dot_dimension_numbers<[1], [0], [0], [1], [0, 0, 1, 1], [], []>} : vector<8x128xbf16>, vector<128x128xbf16>, vector<8x128xf32> -> vector<8x128xf32>
    %28 = vector.broadcast %9 : vector<1x128xf32> to vector<8x128xf32>
    %29 = arith.addf %27, %28 : vector<8x128xf32>
    %cst_16 = arith.constant 5.000000e-01 : f32
    %30 = vector.broadcast %cst_16 : f32 to vector<8x128xf32>
    %31 = arith.mulf %30, %29 : vector<8x128xf32>
    %32 = math.tanh %31 : vector<8x128xf32>
    %cst_17 = arith.constant 5.000000e-01 : f32
    %33 = vector.broadcast %cst_17 : f32 to vector<8x128xf32>
    %34 = arith.mulf %33, %32 : vector<8x128xf32>
    %cst_18 = arith.constant 5.000000e-01 : f32
    %35 = vector.broadcast %cst_18 : f32 to vector<8x128xf32>
    %36 = arith.addf %34, %35 : vector<8x128xf32>
    %37 = arith.truncf %36 : vector<8x128xf32> to vector<8x128xbf16>
    %c0_19 = arith.constant 0 : index
    %c0_20 = arith.constant 0 : index
    %38 = vector.load %arg4[%c0_19, %c0_20] : memref<8x128xbf16, #tpu.memory_space<vmem>>, vector<8x128xbf16>
    tpu.vector_store %arg4[%c0_19, %c0_20], %37 {strides = array<i32>} : memref<8x128xbf16, #tpu.memory_space<vmem>>, vector<8x128xbf16>,
    return
  }
  func.func @transform_0(%arg0: i32) -> (i32, i32) {
    %c0_i32 = arith.constant 0 : i32
    %c0_i32_0 = arith.constant 0 : i32
    return %arg0, %c0_i32 : i32, i32
  }
  func.func @transform_1(%arg0: i32) -> (i32, i32) {
    %c0_i32 = arith.constant 0 : i32
    %c0_i32_0 = arith.constant 0 : i32
    %c0_i32_1 = arith.constant 0 : i32
    return %c0_i32, %c0_i32_0 : i32, i32
  }
  func.func @transform_2(%arg0: i32) -> (i32, i32) {
    %c0_i32 = arith.constant 0 : i32
    %c0_i32_0 = arith.constant 0 : i32
    %c0_i32_1 = arith.constant 0 : i32
    return %c0_i32, %c0_i32_0 : i32, i32
  }
  func.func @transform_3(%arg0: i32) -> (i32, i32) {
    %c0_i32 = arith.constant 0 : i32
    %c0_i32_0 = arith.constant 0 : i32
    return %arg0, %c0_i32 : i32, i32
  }
}

module attributes {stable_mosaic.version = 11 : i64} {
  func.func @_policy_kernel(%arg0: i32, %arg1: memref<8x32xf32, #tpu.memory_space<vmem>>, %arg2: memref<416x128xbf16, #tpu.memory_space<vmem>>, %arg3: memref<8x128xf32, #tpu.memory_space<vmem>>, %arg4: memref<8x128xbf16, #tpu.memory_space<vmem>>) attributes {dimension_semantics = [#tpu.dimension_semantics<parallel>], iteration_bounds = array<i64: 1>, scalar_prefetch = 0 : i64, scratch_operands = 0 : i64, tpu.core_type = #tpu.core_type<tc>, window_params = [{transform_indices = @transform_0, window_bounds = array<i64: 8, 32>}, {pipeline_mode = #tpu.pipeline_mode<synchronous>, transform_indices = @transform_1, window_bounds = array<i64: 416, 128>}, {pipeline_mode = #tpu.pipeline_mode<synchronous>, transform_indices = @transform_2, window_bounds = array<i64: 8, 128>}, {transform_indices = @transform_3, window_bounds = array<i64: 8, 128>}]} {
    %c0 = arith.constant 0 : index
    %c0_0 = arith.constant 0 : index
    %0 = vector.load %arg1[%c0, %c0_0] : memref<8x32xf32, #tpu.memory_space<vmem>>, vector<8x32xf32>
    %1 = arith.truncf %0 : vector<8x32xf32> to vector<8x32xbf16>
    %c0_1 = arith.constant 0 : index
    %c0_2 = arith.constant 0 : index
    %2 = vector.load %arg2[%c0_1, %c0_2] : memref<416x128xbf16, #tpu.memory_space<vmem>>, vector<32x128xbf16>
    %c32 = arith.constant 32 : index
    %c0_3 = arith.constant 0 : index
    %3 = vector.load %arg2[%c32, %c0_3] : memref<416x128xbf16, #tpu.memory_space<vmem>>, vector<128x128xbf16>
    %c160 = arith.constant 160 : index
    %c0_4 = arith.constant 0 : index
    %4 = vector.load %arg2[%c160, %c0_4] : memref<416x128xbf16, #tpu.memory_space<vmem>>, vector<128x128xbf16>
    %c288 = arith.constant 288 : index
    %c0_5 = arith.constant 0 : index
    %5 = vector.load %arg2[%c288, %c0_5] : memref<416x128xbf16, #tpu.memory_space<vmem>>, vector<128x128xbf16>
    %c0_6 = arith.constant 0 : index
    %c0_7 = arith.constant 0 : index
    %6 = vector.load %arg3[%c0_6, %c0_7] : memref<8x128xf32, #tpu.memory_space<vmem>>, vector<1x128xf32>
    %c1 = arith.constant 1 : index
    %c0_8 = arith.constant 0 : index
    %7 = vector.load %arg3[%c1, %c0_8] : memref<8x128xf32, #tpu.memory_space<vmem>>, vector<1x128xf32>
    %c2 = arith.constant 2 : index
    %c0_9 = arith.constant 0 : index
    %8 = vector.load %arg3[%c2, %c0_9] : memref<8x128xf32, #tpu.memory_space<vmem>>, vector<1x128xf32>
    %c3 = arith.constant 3 : index
    %c0_10 = arith.constant 0 : index
    %9 = vector.load %arg3[%c3, %c0_10] : memref<8x128xf32, #tpu.memory_space<vmem>>, vector<1x128xf32>
    %cst = arith.constant dense<0.000000e+00> : vector<8x128xf32>
    %10 = tpu.matmul %1, %2, %cst {dimension_numbers = #tpu.dot_dimension_numbers<[1], [0], [0], [1], [0, 0, 1, 1], [], []>} : vector<8x32xbf16>, vector<32x128xbf16>, vector<8x128xf32> -> vector<8x128xf32>
    %11 = vector.broadcast %6 : vector<1x128xf32> to vector<8x128xf32>
    %12 = arith.addf %10, %11 : vector<8x128xf32>
    %13 = math.tanh %12 : vector<8x128xf32>
    %14 = arith.truncf %13 : vector<8x128xf32> to vector<8x128xbf16>
    %cst_11 = arith.constant dense<0.000000e+00> : vector<8x128xf32>
    %15 = tpu.matmul %14, %3, %cst_11 {dimension_numbers = #tpu.dot_dimension_numbers<[1], [0], [0], [1], [0, 0, 1, 1], [], []>} : vector<8x128xbf16>, vector<128x128xbf16>, vector<8x128xf32> -> vector<8x128xf32>
    %16 = vector.broadcast %7 : vector<1x128xf32> to vector<8x128xf32>
    %17 = arith.addf %15, %16 : vector<8x128xf32>
    %cst_12 = arith.constant 0.000000e+00 : f32
    %18 = vector.broadcast %cst_12 : f32 to vector<8x128xf32>
    %19 = arith.maximumf %17, %18 : vector<8x128xf32>
    %20 = arith.truncf %19 : vector<8x128xf32> to vector<8x128xbf16>
    %cst_13 = arith.constant dense<0.000000e+00> : vector<8x128xf32>
    %21 = tpu.matmul %20, %4, %cst_13 {dimension_numbers = #tpu.dot_dimension_numbers<[1], [0], [0], [1], [0, 0, 1, 1], [], []>} : vector<8x128xbf16>, vector<128x128xbf16>, vector<8x128xf32> -> vector<8x128xf32>
    %22 = vector.broadcast %8 : vector<1x128xf32> to vector<8x128xf32>
    %23 = arith.addf %21, %22 : vector<8x128xf32>
    %cst_14 = arith.constant 0.000000e+00 : f32
    %24 = vector.broadcast %cst_14 : f32 to vector<8x128xf32>
    %25 = arith.maximumf %23, %24 : vector<8x128xf32>
    %26 = arith.truncf %25 : vector<8x128xf32> to vector<8x128xbf16>
    %cst_15 = arith.constant dense<0.000000e+00> : vector<8x128xf32>
    %27 = tpu.matmul %26, %5, %cst_15 {dimension_numbers = #tpu.dot_dimension_numbers<[1], [0], [0], [1], [0, 0, 1, 1], [], []>} : vector<8x128xbf16>, vector<128x128xbf16>, vector<8x128xf32> -> vector<8x128xf32>
    %28 = vector.broadcast %9 : vector<1x128xf32> to vector<8x128xf32>
    %29 = arith.addf %27, %28 : vector<8x128xf32>
    %cst_16 = arith.constant 5.000000e-01 : f32
    %30 = vector.broadcast %cst_16 : f32 to vector<8x128xf32>
    %31 = arith.mulf %30, %29 : vector<8x128xf32>
    %32 = math.tanh %31 : vector<8x128xf32>
    %cst_17 = arith.constant 5.000000e-01 : f32
    %33 = vector.broadcast %cst_17 : f32 to vector<8x128xf32>
    %34 = arith.mulf %33, %32 : vector<8x128xf32>
    %cst_18 = arith.constant 5.000000e-01 : f32
    %35 = vector.broadcast %cst_18 : f32 to vector<8x128xf32>
    %36 = arith.addf %34, %35 : vector<8x128xf32>
    %37 = arith.truncf %36 : vector<8x128xf32> to vector<8x128xbf16>
    %c0_19 = arith.constant 0 : index
    %c0_20 = arith.constant 0 : index
    %38 = vector.load %arg4[%c0_19, %c0_20] : memref<8x128xbf16, #tpu.memory_space<vmem>>, vector<8x128xbf16>
    tpu.vector_store %arg4[%c0_19, %c0_20], %37 {strides = array<i32>} : memref<8x128xbf16, #tpu.memory_space<vmem>>, vector<8x128xbf16>,
    return
  }
  func.func @transform_0(%arg0: i32) -> (i32, i32) {
    %c0_i32 = arith.constant 0 : i32
    %c0_i32_0 = arith.constant 0 : i32
    return %arg0, %c0_i32 : i32, i32
  }
  func.func @transform_1(%arg0: i32) -> (i32, i32) {
    %c0_i32 = arith.constant 0 : i32
    %c0_i32_0 = arith.constant 0 : i32
    %c0_i32_1 = arith.constant 0 : i32
    return %c0_i32, %c0_i32_0 : i32, i32
  }
  func.func @transform_2(%arg0: i32) -> (i32, i32) {
    %c0_i32 = arith.constant 0 : i32
    %c0_i32_0 = arith.constant 0 : i32
    %c0_i32_1 = arith.constant 0 : i32
    return %c0_i32, %c0_i32_0 : i32, i32
  }
  func.func @transform_3(%arg0: i32) -> (i32, i32) {
    %c0_i32 = arith.constant 0 : i32
    %c0_i32_0 = arith.constant 0 : i32
    return %arg0, %c0_i32 : i32, i32
  }
}

</mosaic_0001>

<llo_original>
// kernel: _policy_forward_packed.1
$region0: #{_policy_forward_packed.1}
  #allocation0 [shape = 'u32[]', space=smem, size = 0x4, offset = 0x4, fixed_abs, tag = 'smem constant byte address 0x4 - core index']
  #allocation1 [shape = 'u32[144,128]{1,0:T(1,128)}', space=vmem, size = 0x12000, scoped, tag = 'internal scratch']
  %s0 = inlined_call_operand.hbm [shape: f32[8,32], index: 0, kind: input, shape index: {}]
  %s1 = inlined_call_operand.hbm [shape: bf16[416,128], index: 1, kind: input, shape index: {}]
  %s2 = inlined_call_operand.hbm [shape: f32[8,128], index: 2, kind: input, shape index: {}]
  %s3 = inlined_call_operand.vmem [shape: bf16[8,128], index: 3, kind: output, shape index: {}]
  %s4 = sld [smem:[#allocation0]]
  $region34: #{_policy_forward_packed.1} parent=0
    _
  %s6 = ssub.s32 1, %s4
  %s7 = scalar_select 0, %s6, %s4
  $region1: #{_policy_forward_packed.1} parent=0
    #allocation2 [shape = 'u8[4096]{0}', space=vmem, size = 0x1000, scoped, tag = 'input window, operand 0, single buffered']
    #allocation3 [shape = 's32[1]{0}', space=sflag, size = 0x4, scoped, tag = 'scoped memory for _policy_forward_packed.1']
    #allocation4 [shape = 'u8[106496]{0}', space=vmem, size = 0x1a000, scoped, tag = 'input window, operand 1, single buffered']
    #allocation5 [shape = 's32[1]{0}', space=sflag, size = 0x4, scoped, tag = 'scoped memory for _policy_forward_packed.1']
    #allocation6 [shape = 'u8[4096]{0}', space=vmem, size = 0x1000, scoped, tag = 'input window, operand 2, single buffered']
    %8 = vsyncpa [#allocation3], 0
    %9 = vsyncpa [#allocation5], 0
    // Predicated region
    $region2: #{_policy_forward_packed.1} parent=1 // pred_check
      _
    $region3: #{_policy_forward_packed.1} parent=1 // pred_check_branch
      %11 = sbr.rel (0) target = $region5
    $region4: #{_policy_forward_packed.1} parent=1 // pred_region
      %s13 = ssub.s32 128, 128
      %14 = vsyncadd [#allocation3], %s13
      %s16 = sshll.u32 [#allocation2], 4
      %s17 = int_to_ptr.vmem [resolvable:$true] %s16
      %19 = dma.hbm_to_vmem [thread:$0]  %s0, 128, %s17, [#allocation3]
    $region5: #{_policy_forward_packed.1} parent=1 // pred_fallthru
      _
    // Predicated region
    $region6: #{_policy_forward_packed.1} parent=1 // pred_check
      _
    $region7: #{_policy_forward_packed.1} parent=1 // pred_check_branch
      %21 = sbr.rel (0) target = $region9
    $region8: #{_policy_forward_packed.1} parent=1 // pred_region
      %s23 = ssub.s32 3328, 3328
      %24 = vsyncadd [#allocation5], %s23
      %s25 = sshll.u32 [#allocation4], 4
      %s26 = int_to_ptr.vmem [resolvable:$true] %s25
      %31 = dma.hbm_to_vmem [thread:$0]  %s1, 3328, %s26, [#allocation5], 64, 64, 4
    $region9: #{_policy_forward_packed.1} parent=1 // pred_fallthru
      _
    // Predicated region
    $region10: #{_policy_forward_packed.1} parent=1 // pred_check
      _
    $region11: #{_policy_forward_packed.1} parent=1 // pred_check_branch
      %33 = sbr.rel (0) target = $region13
    $region12: #{_policy_forward_packed.1} parent=1 // pred_region
      %s35 = ssub.s32 128, 128
      %36 = vsyncadd [#allocation5], %s35
      %s38 = sshll.u32 [#allocation6], 4
      %s39 = int_to_ptr.vmem [resolvable:$true] %s38
      %41 = dma.hbm_to_vmem [thread:$0]  %s2, 128, %s39, [#allocation5]
    $region13: #{_policy_forward_packed.1} parent=1 // pred_fallthru
      _
    // Predicated region
    $region14: #{_policy_forward_packed.1} parent=1 // pred_check
      _
    $region15: #{_policy_forward_packed.1} parent=1 // pred_check_branch
      %43 = sbr.rel (0) target = $region17
    $region16: #{_policy_forward_packed.1} parent=1 // pred_region
      %44 = dma.done [#allocation3], 128
    $region17: #{_policy_forward_packed.1} parent=1 // pred_fallthru
      _
    // Predicated region
    $region18: #{_policy_forward_packed.1} parent=1 // pred_check
      _
    $region19: #{_policy_forward_packed.1} parent=1 // pred_check_branch
      %46 = sbr.rel (0) target = $region21
    $region20: #{_policy_forward_packed.1} parent=1 // pred_region
      %47 = dma.done [#allocation5], 3328
    $region21: #{_policy_forward_packed.1} parent=1 // pred_fallthru
      _
    // Predicated region
    $region22: #{_policy_forward_packed.1} parent=1 // pred_check
      _
    $region23: #{_policy_forward_packed.1} parent=1 // pred_check_branch
      %49 = sbr.rel (0) target = $region25
    $region24: #{_policy_forward_packed.1} parent=1 // pred_region
      %50 = dma.done [#allocation5], 128
    $region25: #{_policy_forward_packed.1} parent=1 // pred_fallthru
      _
    %v52 = vld [vmem:[#allocation2] sm:$0xff]
    %v53 = vpack.c.bf16 %v52, %v52
    %v54 = vld [vmem:[#allocation4] sm:$0xf]
    %v55 = vld [vmem:[#allocation4 + $0x4] sm:$0xf]
    %v56 = vld [vmem:[#allocation4 + $0x8] sm:$0xf]
    %v57 = vld [vmem:[#allocation4 + $0xc] sm:$0xf]
    %v58 = vld [vmem:[#allocation4 + $0x10] sm:$0xf]
    %v59 = vld [vmem:[#allocation4 + $0x14] sm:$0xf]
    %v60 = vld [vmem:[#allocation4 + $0x18] sm:$0xf]
    %v61 = vld [vmem:[#allocation4 + $0x1c] sm:$0xf]
    %v62 = vld [vmem:[#allocation4 + $0x20] sm:$0xf]
    %v63 = vld [vmem:[#allocation4 + $0x24] sm:$0xf]
    %v64 = vld [vmem:[#allocation4 + $0x28] sm:$0xf]
    %v65 = vld [vmem:[#allocation4 + $0x2c] sm:$0xf]
    %v66 = vld [vmem:[#allocation4 + $0x30] sm:$0xf]
    %v67 = vld [vmem:[#allocation4 + $0x34] sm:$0xf]
    %v68 = vld [vmem:[#allocation4 + $0x38] sm:$0xf]
    %v69 = vld [vmem:[#allocation4 + $0x3c] sm:$0xf]
    %v70 = vld [vmem:[#allocation4 + $0x40] sm:$0xf]
    %v71 = vld [vmem:[#allocation4 + $0x44] sm:$0xf]
    %v72 = vld [vmem:[#allocation4 + $0x48] sm:$0xf]
    %v73 = vld [vmem:[#allocation4 + $0x4c] sm:$0xf]
    %v74 = vld [vmem:[#allocation4 + $0x50] sm:$0xf]
    %v75 = vld [vmem:[#allocation4 + $0x54] sm:$0xf]
    %v76 = vld [vmem:[#allocation4 + $0x58] sm:$0xf]
    %v77 = vld [vmem:[#allocation4 + $0x5c] sm:$0xf]
    %v78 = vld [vmem:[#allocation4 + $0x60] sm:$0xf]
    %v79 = vld [vmem:[#allocation4 + $0x64] sm:$0xf]
    %v80 = vld [vmem:[#allocation4 + $0x68] sm:$0xf]
    %v81 = vld [vmem:[#allocation4 + $0x6c] sm:$0xf]
    %v82 = vld [vmem:[#allocation4 + $0x70] sm:$0xf]
    %v83 = vld [vmem:[#allocation4 + $0x74] sm:$0xf]
    %v84 = vld [vmem:[#allocation4 + $0x78] sm:$0xf]
    %v85 = vld [vmem:[#allocation4 + $0x7c] sm:$0xf]
    %v86 = vld [vmem:[#allocation4 + $0x80] sm:$0xf]
    %v87 = vld [vmem:[#allocation4 + $0x84] sm:$0xf]
    %v88 = vld [vmem:[#allocation4 + $0x88] sm:$0xf]
    %v89 = vld [vmem:[#allocation4 + $0x8c] sm:$0xf]
    %v90 = vld [vmem:[#allocation4 + $0x90] sm:$0xf]
    %v91 = vld [vmem:[#allocation4 + $0x94] sm:$0xf]
    %v92 = vld [vmem:[#allocation4 + $0x98] sm:$0xf]
    %v93 = vld [vmem:[#allocation4 + $0x9c] sm:$0xf]
    %v94 = vld [vmem:[#allocation4 + $0xa0] sm:$0xf]
    %v95 = vld [vmem:[#allocation4 + $0xa4] sm:$0xf]
    %v96 = vld [vmem:[#allocation4 + $0xa8] sm:$0xf]
    %v97 = vld [vmem:[#allocation4 + $0xac] sm:$0xf]
    %v98 = vld [vmem:[#allocation4 + $0xb0] sm:$0xf]
    %v99 = vld [vmem:[#allocation4 + $0xb4] sm:$0xf]
    %v100 = vld [vmem:[#allocation4 + $0xb8] sm:$0xf]
    %v101 = vld [vmem:[#allocation4 + $0xbc] sm:$0xf]
    %v102 = vld [vmem:[#allocation4 + $0xc0] sm:$0xf]
    %v103 = vld [vmem:[#allocation4 + $0xc4] sm:$0xf]
    %v104 = vld [vmem:[#allocation4 + $0xc8] sm:$0xf]
    %v105 = vld [vmem:[#allocation4 + $0xcc] sm:$0xf]
    %v106 = vld [vmem:[#allocation6] sm:$0x1]
    %v107 = vld [vmem:[#allocation6 + $0x1] sm:$0x1]
    %v108 = vld [vmem:[#allocation6 + $0x2] sm:$0x1]
    %v109 = vld [vmem:[#allocation6 + $0x3] sm:$0x1]
    %v110 = vlaneseq
    %v111 = vshrl.u32 %v110, 7
    %v112 = vsub.s32 0, %v111
    %v113 = vrot.slane %v106, %v112
    %v118 = vunpack.c.l.b16 %v54
    %v119 = vunpack.c.l.b16 %v55
    %v120 = vunpack.c.l.b16 %v56
    %v121 = vunpack.c.l.b16 %v57
    %v122 = vpack.c.b16 %v119, %v118
    %v123 = vpack.c.b16 %v121, %v120
    %vm126 = vcmask 261120
    %v128 = vsel %vm126, %v53, 0
    %130 = vmatprep.subr.bf16.mxu0 0
    %131 = vmatpush1.bf16.msra.mxu0 %v122
    %132 = vmatprep.subr.bf16.mxu0 0
    %133 = vmatpush1.bf16.msra.mxu0 %v123
    %134 = vmatprep.subr.bf16.mxu0 0
    %135 = vmatpush1.bf16.msra.mxu0 0
    %136 = vmatprep.subr.bf16.mxu0 0
    %137 = vmatpush1.bf16.msra.mxu0 0
    %138 = vmatprep.subr.bf16.mxu0 0
    %139 = vmatpush1.bf16.msra.mxu0 0
    %140 = vmatprep.subr.bf16.mxu0 0
    %141 = vmatpush1.bf16.msra.mxu0 0
    %142 = vmatprep.subr.bf16.mxu0 0
    %143 = vmatpush1.bf16.msra.mxu0 0
    %144 = vmatprep.subr.bf16.mxu0 0
    %145 = vmatpush1.bf16.msra.mxu0 0
    %146 = vmatprep.subr.bf16.mxu0 0
    %147 = vmatpush1.bf16.msra.mxu0 0
    %148 = vmatprep.subr.bf16.mxu0 0
    %149 = vmatpush1.bf16.msra.mxu0 0
    %150 = vmatprep.subr.bf16.mxu0 0
    %151 = vmatpush1.bf16.msra.mxu0 0
    %152 = vmatprep.subr.bf16.mxu0 0
    %153 = vmatpush1.bf16.msra.mxu0 0
    %154 = vmatprep.subr.bf16.mxu0 0
    %155 = vmatpush1.bf16.msra.mxu0 0
    %156 = vmatprep.subr.bf16.mxu0 0
    %157 = vmatpush1.bf16.msra.mxu0 0
    %158 = vmatprep.subr.bf16.mxu0 0
    %159 = vmatpush1.bf16.msra.mxu0 0
    %160 = vmatprep.subr.bf16.mxu0 0
    %161 = vmatpush1.bf16.msra.mxu0 0
    %162 = vmatprep.mubr.bf16.mxu0 0
    %163 = vmatmul.mubr.bf16.gmra.mrb[0].mxu0 %v128
    %v164 = vpop.f32.mrb[0].mxu0
    %v165 = vadd.f32 %v113, %v164
    %v166 = vpop.f32.mrb[0].mxu0
    %v167 = vpop.f32.mrb[0].mxu0
    %v168 = vpop.f32.mrb[0].mxu0
    %169 = vdwg.mxu0
    %v170 = vtanh.pop %v165
    %v171 = vpack.c.bf16 %v170, %v170
    %v172 = vlaneseq
    %v173 = vshrl.u32 %v172, 7
    %v174 = vsub.s32 0, %v173
    %v175 = vrot.slane %v107, %v174
    %v192 = vunpack.c.l.b16 %v58
    %v193 = vunpack.c.l.b16 %v59
    %v194 = vunpack.c.l.b16 %v60
    %v195 = vunpack.c.l.b16 %v61
    %v196 = vunpack.c.l.b16 %v62
    %v197 = vunpack.c.l.b16 %v63
    %v198 = vunpack.c.l.b16 %v64
    %v199 = vunpack.c.l.b16 %v65
    %v200 = vunpack.c.l.b16 %v66
    %v201 = vunpack.c.l.b16 %v67
    %v202 = vunpack.c.l.b16 %v68
    %v203 = vunpack.c.l.b16 %v69
    %v204 = vunpack.c.l.b16 %v70
    %v205 = vunpack.c.l.b16 %v71
    %v206 = vunpack.c.l.b16 %v72
    %v207 = vunpack.c.l.b16 %v73
    %v208 = vpack.c.b16 %v193, %v192
    %v209 = vpack.c.b16 %v195, %v194
    %v210 = vpack.c.b16 %v197, %v196
    %v211 = vpack.c.b16 %v199, %v198
    %v212 = vpack.c.b16 %v201, %v200
    %v213 = vpack.c.b16 %v203, %v202
    %v214 = vpack.c.b16 %v205, %v204
    %v215 = vpack.c.b16 %v207, %v206
    %224 = vmatprep.subr.bf16.mxu0 0
    %225 = vmatpush1.bf16.msra.mxu0 %v208
    %226 = vmatprep.subr.bf16.mxu0 0
    %227 = vmatpush1.bf16.msra.mxu0 %v209
    %228 = vmatprep.subr.bf16.mxu0 0
    %229 = vmatpush1.bf16.msra.mxu0 %v210
    %230 = vmatprep.subr.bf16.mxu0 0
    %231 = vmatpush1.bf16.msra.mxu0 %v211
    %232 = vmatprep.subr.bf16.mxu0 0
    %233 = vmatpush1.bf16.msra.mxu0 %v212
    %234 = vmatprep.subr.bf16.mxu0 0
    %235 = vmatpush1.bf16.msra.mxu0 %v213
    %236 = vmatprep.subr.bf16.mxu0 0
    %237 = vmatpush1.bf16.msra.mxu0 %v214
    %238 = vmatprep.subr.bf16.mxu0 0
    %239 = vmatpush1.bf16.msra.mxu0 %v215
    %240 = vmatprep.subr.bf16.mxu0 0
    %241 = vmatpush1.bf16.msra.mxu0 0
    %242 = vmatprep.subr.bf16.mxu0 0
    %243 = vmatpush1.bf16.msra.mxu0 0
    %244 = vmatprep.subr.bf16.mxu0 0
    %245 = vmatpush1.bf16.msra.mxu0 0
    %246 = vmatprep.subr.bf16.mxu0 0
    %247 = vmatpush1.bf16.msra.mxu0 0
    %248 = vmatprep.subr.bf16.mxu0 0
    %249 = vmatpush1.bf16.msra.mxu0 0
    %250 = vmatprep.subr.bf16.mxu0 0
    %251 = vmatpush1.bf16.msra.mxu0 0
    %252 = vmatprep.subr.bf16.mxu0 0
    %253 = vmatpush1.bf16.msra.mxu0 0
    %254 = vmatprep.subr.bf16.mxu0 0
    %255 = vmatpush1.bf16.msra.mxu0 0
    %256 = vmatprep.mubr.bf16.mxu0 0
    %257 = vmatmul.mubr.bf16.gmra.mrb[0].mxu0 %v171
    %v258 = vpop.f32.mrb[0].mxu0
    %v259 = vadd.f32 %v175, %v258
    %v260 = vpop.f32.mrb[0].mxu0
    %v261 = vpop.f32.mrb[0].mxu0
    %v262 = vpop.f32.mrb[0].mxu0
    %263 = vdwg.mxu0
    %v264 = vmax.f32 %v259, 0.0
    %v265 = vpack.c.bf16 %v264, %v264
    %v266 = vlaneseq
    %v267 = vshrl.u32 %v266, 7
    %v268 = vsub.s32 0, %v267
    %v269 = vrot.slane %v108, %v268
    %v286 = vunpack.c.l.b16 %v74
    %v287 = vunpack.c.l.b16 %v75
    %v288 = vunpack.c.l.b16 %v76
    %v289 = vunpack.c.l.b16 %v77
    %v290 = vunpack.c.l.b16 %v78
    %v291 = vunpack.c.l.b16 %v79
    %v292 = vunpack.c.l.b16 %v80
    %v293 = vunpack.c.l.b16 %v81
    %v294 = vunpack.c.l.b16 %v82
    %v295 = vunpack.c.l.b16 %v83
    %v296 = vunpack.c.l.b16 %v84
    %v297 = vunpack.c.l.b16 %v85
    %v298 = vunpack.c.l.b16 %v86
    %v299 = vunpack.c.l.b16 %v87
    %v300 = vunpack.c.l.b16 %v88
    %v301 = vunpack.c.l.b16 %v89
    %v302 = vpack.c.b16 %v287, %v286
    %v303 = vpack.c.b16 %v289, %v288
    %v304 = vpack.c.b16 %v291, %v290
    %v305 = vpack.c.b16 %v293, %v292
    %v306 = vpack.c.b16 %v295, %v294
    %v307 = vpack.c.b16 %v297, %v296
    %v308 = vpack.c.b16 %v299, %v298
    %v309 = vpack.c.b16 %v301, %v300
    %318 = vmatprep.subr.bf16.mxu0 0
    %319 = vmatpush1.bf16.msra.mxu0 %v302
    %320 = vmatprep.subr.bf16.mxu0 0
    %321 = vmatpush1.bf16.msra.mxu0 %v303
    %322 = vmatprep.subr.bf16.mxu0 0
    %323 = vmatpush1.bf16.msra.mxu0 %v304
    %324 = vmatprep.subr.bf16.mxu0 0
    %325 = vmatpush1.bf16.msra.mxu0 %v305
    %326 = vmatprep.subr.bf16.mxu0 0
    %327 = vmatpush1.bf16.msra.mxu0 %v306
    %328 = vmatprep.subr.bf16.mxu0 0
    %329 = vmatpush1.bf16.msra.mxu0 %v307
    %330 = vmatprep.subr.bf16.mxu0 0
    %331 = vmatpush1.bf16.msra.mxu0 %v308
    %332 = vmatprep.subr.bf16.mxu0 0
    %333 = vmatpush1.bf16.msra.mxu0 %v309
    %334 = vmatprep.subr.bf16.mxu0 0
    %335 = vmatpush1.bf16.msra.mxu0 0
    %336 = vmatprep.subr.bf16.mxu0 0
    %337 = vmatpush1.bf16.msra.mxu0 0
    %338 = vmatprep.subr.bf16.mxu0 0
    %339 = vmatpush1.bf16.msra.mxu0 0
    %340 = vmatprep.subr.bf16.mxu0 0
    %341 = vmatpush1.bf16.msra.mxu0 0
    %342 = vmatprep.subr.bf16.mxu0 0
    %343 = vmatpush1.bf16.msra.mxu0 0
    %344 = vmatprep.subr.bf16.mxu0 0
    %345 = vmatpush1.bf16.msra.mxu0 0
    %346 = vmatprep.subr.bf16.mxu0 0
    %347 = vmatpush1.bf16.msra.mxu0 0
    %348 = vmatprep.subr.bf16.mxu0 0
    %349 = vmatpush1.bf16.msra.mxu0 0
    %350 = vmatprep.mubr.bf16.mxu0 0
    %351 = vmatmul.mubr.bf16.gmra.mrb[0].mxu0 %v265
    %v352 = vpop.f32.mrb[0].mxu0
    %v353 = vadd.f32 %v269, %v352
    %v354 = vpop.f32.mrb[0].mxu0
    %v355 = vpop.f32.mrb[0].mxu0
    %v356 = vpop.f32.mrb[0].mxu0
    %357 = vdwg.mxu0
    %v358 = vmax.f32 %v353, 0.0
    %v359 = vpack.c.bf16 %v358, %v358
    %v360 = vlaneseq
    %v361 = vshrl.u32 %v360, 7
    %v362 = vsub.s32 0, %v361
    %v363 = vrot.slane %v109, %v362
    %v380 = vunpack.c.l.b16 %v90
    %v381 = vunpack.c.l.b16 %v91
    %v382 = vunpack.c.l.b16 %v92
    %v383 = vunpack.c.l.b16 %v93
    %v384 = vunpack.c.l.b16 %v94
    %v385 = vunpack.c.l.b16 %v95
    %v386 = vunpack.c.l.b16 %v96
    %v387 = vunpack.c.l.b16 %v97
    %v388 = vunpack.c.l.b16 %v98
    %v389 = vunpack.c.l.b16 %v99
    %v390 = vunpack.c.l.b16 %v100
    %v391 = vunpack.c.l.b16 %v101
    %v392 = vunpack.c.l.b16 %v102
    %v393 = vunpack.c.l.b16 %v103
    %v394 = vunpack.c.l.b16 %v104
    %v395 = vunpack.c.l.b16 %v105
    %v396 = vpack.c.b16 %v381, %v380
    %v397 = vpack.c.b16 %v383, %v382
    %v398 = vpack.c.b16 %v385, %v384
    %v399 = vpack.c.b16 %v387, %v386
    %v400 = vpack.c.b16 %v389, %v388
    %v401 = vpack.c.b16 %v391, %v390
    %v402 = vpack.c.b16 %v393, %v392
    %v403 = vpack.c.b16 %v395, %v394
    %412 = vmatprep.subr.bf16.mxu0 0
    %413 = vmatpush1.bf16.msra.mxu0 %v396
    %414 = vmatprep.subr.bf16.mxu0 0
    %415 = vmatpush1.bf16.msra.mxu0 %v397
    %416 = vmatprep.subr.bf16.mxu0 0
    %417 = vmatpush1.bf16.msra.mxu0 %v398
    %418 = vmatprep.subr.bf16.mxu0 0
    %419 = vmatpush1.bf16.msra.mxu0 %v399
    %420 = vmatprep.subr.bf16.mxu0 0
    %421 = vmatpush1.bf16.msra.mxu0 %v400
    %422 = vmatprep.subr.bf16.mxu0 0
    %423 = vmatpush1.bf16.msra.mxu0 %v401
    %424 = vmatprep.subr.bf16.mxu0 0
    %425 = vmatpush1.bf16.msra.mxu0 %v402
    %426 = vmatprep.subr.bf16.mxu0 0
    %427 = vmatpush1.bf16.msra.mxu0 %v403
    %428 = vmatprep.subr.bf16.mxu0 0
    %429 = vmatpush1.bf16.msra.mxu0 0
    %430 = vmatprep.subr.bf16.mxu0 0
    %431 = vmatpush1.bf16.msra.mxu0 0
    %432 = vmatprep.subr.bf16.mxu0 0
    %433 = vmatpush1.bf16.msra.mxu0 0
    %434 = vmatprep.subr.bf16.mxu0 0
    %435 = vmatpush1.bf16.msra.mxu0 0
    %436 = vmatprep.subr.bf16.mxu0 0
    %437 = vmatpush1.bf16.msra.mxu0 0
    %438 = vmatprep.subr.bf16.mxu0 0
    %439 = vmatpush1.bf16.msra.mxu0 0
    %440 = vmatprep.subr.bf16.mxu0 0
    %441 = vmatpush1.bf16.msra.mxu0 0
    %442 = vmatprep.subr.bf16.mxu0 0
    %443 = vmatpush1.bf16.msra.mxu0 0
    %444 = vmatprep.mubr.bf16.mxu0 0
    %445 = vmatmul.mubr.bf16.gmra.mrb[0].mxu0 %v359
    %v446 = vpop.f32.mrb[0].mxu0
    %v447 = vadd.f32 %v363, %v446
    %v448 = vpop.f32.mrb[0].mxu0
    %v449 = vpop.f32.mrb[0].mxu0
    %v450 = vpop.f32.mrb[0].mxu0
    %451 = vdwg.mxu0
    %v452 = vmul.f32 %v447, 0.5
    %v453 = vtanh.pop %v452
    %v454 = vmul.f32 %v453, 0.5
    %v455 = vadd.f32 %v454, 0.5
    %v456 = vpack.c.bf16 %v455, %v455
    %457 = vst [vmem:[%s3] sm:$0xf] %v456
    // Predicated region
    $region26: #{_policy_forward_packed.1} parent=1 // pred_check
      _
    $region27: #{_policy_forward_packed.1} parent=1 // pred_check_branch
      %459 = sbr.rel (0) target = $region29
    $region28: #{_policy_forward_packed.1} parent=1 // pred_region
      _
    $region29: #{_policy_forward_packed.1} parent=1 // pred_fallthru
      _
    // Predicated region
    $region30: #{_policy_forward_packed.1} parent=1 // pred_check
      _
    $region31: #{_policy_forward_packed.1} parent=1 // pred_check_branch
      %461 = sbr.rel (0) target = $region33
    $region32: #{_policy_forward_packed.1} parent=1 // pred_region
      _
    $region33: #{_policy_forward_packed.1} parent=1 // pred_fallthru
      _
    %462 = vsyncpa [#allocation3], 1
    %463 = vsyncpa [#allocation5], 1

// kernel: _policy_forward_packed.1
$region0: #{_policy_forward_packed.1}
  #allocation0 [shape = 'u32[]', space=smem, size = 0x4, offset = 0x4, fixed_abs, tag = 'smem constant byte address 0x4 - core index']
  #allocation1 [shape = 'u32[144,128]{1,0:T(1,128)}', space=vmem, size = 0x12000, scoped, tag = 'internal scratch']
  %s0 = inlined_call_operand.hbm [shape: f32[8,32], index: 0, kind: input, shape index: {}]
  %s1 = inlined_call_operand.hbm [shape: bf16[416,128], index: 1, kind: input, shape index: {}]
  %s2 = inlined_call_operand.hbm [shape: f32[8,128], index: 2, kind: input, shape index: {}]
  %s3 = inlined_call_operand.vmem [shape: bf16[8,128], index: 3, kind: output, shape index: {}]
  %s4 = sld [smem:[#allocation0]]
  $region34: #{_policy_forward_packed.1} parent=0
    _
  %s6 = ssub.s32 1, %s4
  %s7 = scalar_select 0, %s6, %s4
  $region1: #{_policy_forward_packed.1} parent=0
    #allocation2 [shape = 'u8[4096]{0}', space=vmem, size = 0x1000, scoped, tag = 'input window, operand 0, single buffered']
    #allocation3 [shape = 's32[1]{0}', space=sflag, size = 0x4, scoped, tag = 'scoped memory for _policy_forward_packed.1']
    #allocation4 [shape = 'u8[106496]{0}', space=vmem, size = 0x1a000, scoped, tag = 'input window, operand 1, single buffered']
    #allocation5 [shape = 's32[1]{0}', space=sflag, size = 0x4, scoped, tag = 'scoped memory for _policy_forward_packed.1']
    #allocation6 [shape = 'u8[4096]{0}', space=vmem, size = 0x1000, scoped, tag = 'input window, operand 2, single buffered']
    %8 = vsyncpa [#allocation3], 0
    %9 = vsyncpa [#allocation5], 0
    // Predicated region
    $region2: #{_policy_forward_packed.1} parent=1 // pred_check
      _
    $region3: #{_policy_forward_packed.1} parent=1 // pred_check_branch
      %11 = sbr.rel (0) target = $region5
    $region4: #{_policy_forward_packed.1} parent=1 // pred_region
      %s13 = ssub.s32 128, 128
      %14 = vsyncadd [#allocation3], %s13
      %s16 = sshll.u32 [#allocation2], 4
      %s17 = int_to_ptr.vmem [resolvable:$true] %s16
      %19 = dma.hbm_to_vmem [thread:$0]  %s0, 128, %s17, [#allocation3]
    $region5: #{_policy_forward_packed.1} parent=1 // pred_fallthru
      _
    // Predicated region
    $region6: #{_policy_forward_packed.1} parent=1 // pred_check
      _
    $region7: #{_policy_forward_packed.1} parent=1 // pred_check_branch
      %21 = sbr.rel (0) target = $region9
    $region8: #{_policy_forward_packed.1} parent=1 // pred_region
      %s23 = ssub.s32 3328, 3328
      %24 = vsyncadd [#allocation5], %s23
      %s25 = sshll.u32 [#allocation4], 4
      %s26 = int_to_ptr.vmem [resolvable:$true] %s25
      %31 = dma.hbm_to_vmem [thread:$0]  %s1, 3328, %s26, [#allocation5], 64, 64, 4
    $region9: #{_policy_forward_packed.1} parent=1 // pred_fallthru
      _
    // Predicated region
    $region10: #{_policy_forward_packed.1} parent=1 // pred_check
      _
    $region11: #{_policy_forward_packed.1} parent=1 // pred_check_branch
      %33 = sbr.rel (0) target = $region13
    $region12: #{_policy_forward_packed.1} parent=1 // pred_region
      %s35 = ssub.s32 128, 128
      %36 = vsyncadd [#allocation5], %s35
      %s38 = sshll.u32 [#allocation6], 4
      %s39 = int_to_ptr.vmem [resolvable:$true] %s38
      %41 = dma.hbm_to_vmem [thread:$0]  %s2, 128, %s39, [#allocation5]
    $region13: #{_policy_forward_packed.1} parent=1 // pred_fallthru
      _
    // Predicated region
    $region14: #{_policy_forward_packed.1} parent=1 // pred_check
      _
    $region15: #{_policy_forward_packed.1} parent=1 // pred_check_branch
      %43 = sbr.rel (0) target = $region17
    $region16: #{_policy_forward_packed.1} parent=1 // pred_region
      %44 = dma.done [#allocation3], 128
    $region17: #{_policy_forward_packed.1} parent=1 // pred_fallthru
      _
    // Predicated region
    $region18: #{_policy_forward_packed.1} parent=1 // pred_check
      _
    $region19: #{_policy_forward_packed.1} parent=1 // pred_check_branch
      %46 = sbr.rel (0) target = $region21
    $region20: #{_policy_forward_packed.1} parent=1 // pred_region
      %47 = dma.done [#allocation5], 3328
    $region21: #{_policy_forward_packed.1} parent=1 // pred_fallthru
      _
    // Predicated region
    $region22: #{_policy_forward_packed.1} parent=1 // pred_check
      _
    $region23: #{_policy_forward_packed.1} parent=1 // pred_check_branch
      %49 = sbr.rel (0) target = $region25
    $region24: #{_policy_forward_packed.1} parent=1 // pred_region
      %50 = dma.done [#allocation5], 128
    $region25: #{_policy_forward_packed.1} parent=1 // pred_fallthru
      _
    %v52 = vld [vmem:[#allocation2] sm:$0xff]
    %v53 = vpack.c.bf16 %v52, %v52
    %v54 = vld [vmem:[#allocation4] sm:$0xf]
    %v55 = vld [vmem:[#allocation4 + $0x4] sm:$0xf]
    %v56 = vld [vmem:[#allocation4 + $0x8] sm:$0xf]
    %v57 = vld [vmem:[#allocation4 + $0xc] sm:$0xf]
    %v58 = vld [vmem:[#allocation4 + $0x10] sm:$0xf]
    %v59 = vld [vmem:[#allocation4 + $0x14] sm:$0xf]
    %v60 = vld [vmem:[#allocation4 + $0x18] sm:$0xf]
    %v61 = vld [vmem:[#allocation4 + $0x1c] sm:$0xf]
    %v62 = vld [vmem:[#allocation4 + $0x20] sm:$0xf]
    %v63 = vld [vmem:[#allocation4 + $0x24] sm:$0xf]
    %v64 = vld [vmem:[#allocation4 + $0x28] sm:$0xf]
    %v65 = vld [vmem:[#allocation4 + $0x2c] sm:$0xf]
    %v66 = vld [vmem:[#allocation4 + $0x30] sm:$0xf]
    %v67 = vld [vmem:[#allocation4 + $0x34] sm:$0xf]
    %v68 = vld [vmem:[#allocation4 + $0x38] sm:$0xf]
    %v69 = vld [vmem:[#allocation4 + $0x3c] sm:$0xf]
    %v70 = vld [vmem:[#allocation4 + $0x40] sm:$0xf]
    %v71 = vld [vmem:[#allocation4 + $0x44] sm:$0xf]
    %v72 = vld [vmem:[#allocation4 + $0x48] sm:$0xf]
    %v73 = vld [vmem:[#allocation4 + $0x4c] sm:$0xf]
    %v74 = vld [vmem:[#allocation4 + $0x50] sm:$0xf]
    %v75 = vld [vmem:[#allocation4 + $0x54] sm:$0xf]
    %v76 = vld [vmem:[#allocation4 + $0x58] sm:$0xf]
    %v77 = vld [vmem:[#allocation4 + $0x5c] sm:$0xf]
    %v78 = vld [vmem:[#allocation4 + $0x60] sm:$0xf]
    %v79 = vld [vmem:[#allocation4 + $0x64] sm:$0xf]
    %v80 = vld [vmem:[#allocation4 + $0x68] sm:$0xf]
    %v81 = vld [vmem:[#allocation4 + $0x6c] sm:$0xf]
    %v82 = vld [vmem:[#allocation4 + $0x70] sm:$0xf]
    %v83 = vld [vmem:[#allocation4 + $0x74] sm:$0xf]
    %v84 = vld [vmem:[#allocation4 + $0x78] sm:$0xf]
    %v85 = vld [vmem:[#allocation4 + $0x7c] sm:$0xf]
    %v86 = vld [vmem:[#allocation4 + $0x80] sm:$0xf]
    %v87 = vld [vmem:[#allocation4 + $0x84] sm:$0xf]
    %v88 = vld [vmem:[#allocation4 + $0x88] sm:$0xf]
    %v89 = vld [vmem:[#allocation4 + $0x8c] sm:$0xf]
    %v90 = vld [vmem:[#allocation4 + $0x90] sm:$0xf]
    %v91 = vld [vmem:[#allocation4 + $0x94] sm:$0xf]
    %v92 = vld [vmem:[#allocation4 + $0x98] sm:$0xf]
    %v93 = vld [vmem:[#allocation4 + $0x9c] sm:$0xf]
    %v94 = vld [vmem:[#allocation4 + $0xa0] sm:$0xf]
    %v95 = vld [vmem:[#allocation4 + $0xa4] sm:$0xf]
    %v96 = vld [vmem:[#allocation4 + $0xa8] sm:$0xf]
    %v97 = vld [vmem:[#allocation4 + $0xac] sm:$0xf]
    %v98 = vld [vmem:[#allocation4 + $0xb0] sm:$0xf]
    %v99 = vld [vmem:[#allocation4 + $0xb4] sm:$0xf]
    %v100 = vld [vmem:[#allocation4 + $0xb8] sm:$0xf]
    %v101 = vld [vmem:[#allocation4 + $0xbc] sm:$0xf]
    %v102 = vld [vmem:[#allocation4 + $0xc0] sm:$0xf]
    %v103 = vld [vmem:[#allocation4 + $0xc4] sm:$0xf]
    %v104 = vld [vmem:[#allocation4 + $0xc8] sm:$0xf]
    %v105 = vld [vmem:[#allocation4 + $0xcc] sm:$0xf]
    %v106 = vld [vmem:[#allocation6] sm:$0x1]
    %v107 = vld [vmem:[#allocation6 + $0x1] sm:$0x1]
    %v108 = vld [vmem:[#allocation6 + $0x2] sm:$0x1]
    %v109 = vld [vmem:[#allocation6 + $0x3] sm:$0x1]
    %v110 = vlaneseq
    %v111 = vshrl.u32 %v110, 7
    %v112 = vsub.s32 0, %v111
    %v113 = vrot.slane %v106, %v112
    %v118 = vunpack.c.l.b16 %v54
    %v119 = vunpack.c.l.b16 %v55
    %v120 = vunpack.c.l.b16 %v56
    %v121 = vunpack.c.l.b16 %v57
    %v122 = vpack.c.b16 %v119, %v118
    %v123 = vpack.c.b16 %v121, %v120
    %vm126 = vcmask 261120
    %v128 = vsel %vm126, %v53, 0
    %130 = vmatprep.subr.bf16.mxu0 0
    %131 = vmatpush1.bf16.msra.mxu0 %v122
    %132 = vmatprep.subr.bf16.mxu0 0
    %133 = vmatpush1.bf16.msra.mxu0 %v123
    %134 = vmatprep.subr.bf16.mxu0 0
    %135 = vmatpush1.bf16.msra.mxu0 0
    %136 = vmatprep.subr.bf16.mxu0 0
    %137 = vmatpush1.bf16.msra.mxu0 0
    %138 = vmatprep.subr.bf16.mxu0 0
    %139 = vmatpush1.bf16.msra.mxu0 0
    %140 = vmatprep.subr.bf16.mxu0 0
    %141 = vmatpush1.bf16.msra.mxu0 0
    %142 = vmatprep.subr.bf16.mxu0 0
    %143 = vmatpush1.bf16.msra.mxu0 0
    %144 = vmatprep.subr.bf16.mxu0 0
    %145 = vmatpush1.bf16.msra.mxu0 0
    %146 = vmatprep.subr.bf16.mxu0 0
    %147 = vmatpush1.bf16.msra.mxu0 0
    %148 = vmatprep.subr.bf16.mxu0 0
    %149 = vmatpush1.bf16.msra.mxu0 0
    %150 = vmatprep.subr.bf16.mxu0 0
    %151 = vmatpush1.bf16.msra.mxu0 0
    %152 = vmatprep.subr.bf16.mxu0 0
    %153 = vmatpush1.bf16.msra.mxu0 0
    %154 = vmatprep.subr.bf16.mxu0 0
    %155 = vmatpush1.bf16.msra.mxu0 0
    %156 = vmatprep.subr.bf16.mxu0 0
    %157 = vmatpush1.bf16.msra.mxu0 0
    %158 = vmatprep.subr.bf16.mxu0 0
    %159 = vmatpush1.bf16.msra.mxu0 0
    %160 = vmatprep.subr.bf16.mxu0 0
    %161 = vmatpush1.bf16.msra.mxu0 0
    %162 = vmatprep.mubr.bf16.mxu0 0
    %163 = vmatmul.mubr.bf16.gmra.mrb[0].mxu0 %v128
    %v164 = vpop.f32.mrb[0].mxu0
    %v165 = vadd.f32 %v113, %v164
    %v166 = vpop.f32.mrb[0].mxu0
    %v167 = vpop.f32.mrb[0].mxu0
    %v168 = vpop.f32.mrb[0].mxu0
    %169 = vdwg.mxu0
    %v170 = vtanh.pop %v165
    %v171 = vpack.c.bf16 %v170, %v170
    %v172 = vlaneseq
    %v173 = vshrl.u32 %v172, 7
    %v174 = vsub.s32 0, %v173
    %v175 = vrot.slane %v107, %v174
    %v192 = vunpack.c.l.b16 %v58
    %v193 = vunpack.c.l.b16 %v59
    %v194 = vunpack.c.l.b16 %v60
    %v195 = vunpack.c.l.b16 %v61
    %v196 = vunpack.c.l.b16 %v62
    %v197 = vunpack.c.l.b16 %v63
    %v198 = vunpack.c.l.b16 %v64
    %v199 = vunpack.c.l.b16 %v65
    %v200 = vunpack.c.l.b16 %v66
    %v201 = vunpack.c.l.b16 %v67
    %v202 = vunpack.c.l.b16 %v68
    %v203 = vunpack.c.l.b16 %v69
    %v204 = vunpack.c.l.b16 %v70
    %v205 = vunpack.c.l.b16 %v71
    %v206 = vunpack.c.l.b16 %v72
    %v207 = vunpack.c.l.b16 %v73
    %v208 = vpack.c.b16 %v193, %v192
    %v209 = vpack.c.b16 %v195, %v194
    %v210 = vpack.c.b16 %v197, %v196
    %v211 = vpack.c.b16 %v199, %v198
    %v212 = vpack.c.b16 %v201, %v200
    %v213 = vpack.c.b16 %v203, %v202
    %v214 = vpack.c.b16 %v205, %v204
    %v215 = vpack.c.b16 %v207, %v206
    %224 = vmatprep.subr.bf16.mxu0 0
    %225 = vmatpush1.bf16.msra.mxu0 %v208
    %226 = vmatprep.subr.bf16.mxu0 0
    %227 = vmatpush1.bf16.msra.mxu0 %v209
    %228 = vmatprep.subr.bf16.mxu0 0
    %229 = vmatpush1.bf16.msra.mxu0 %v210
    %230 = vmatprep.subr.bf16.mxu0 0
    %231 = vmatpush1.bf16.msra.mxu0 %v211
    %232 = vmatprep.subr.bf16.mxu0 0
    %233 = vmatpush1.bf16.msra.mxu0 %v212
    %234 = vmatprep.subr.bf16.mxu0 0
    %235 = vmatpush1.bf16.msra.mxu0 %v213
    %236 = vmatprep.subr.bf16.mxu0 0
    %237 = vmatpush1.bf16.msra.mxu0 %v214
    %238 = vmatprep.subr.bf16.mxu0 0
    %239 = vmatpush1.bf16.msra.mxu0 %v215
    %240 = vmatprep.subr.bf16.mxu0 0
    %241 = vmatpush1.bf16.msra.mxu0 0
    %242 = vmatprep.subr.bf16.mxu0 0
    %243 = vmatpush1.bf16.msra.mxu0 0
    %244 = vmatprep.subr.bf16.mxu0 0
    %245 = vmatpush1.bf16.msra.mxu0 0
    %246 = vmatprep.subr.bf16.mxu0 0
    %247 = vmatpush1.bf16.msra.mxu0 0
    %248 = vmatprep.subr.bf16.mxu0 0
    %249 = vmatpush1.bf16.msra.mxu0 0
    %250 = vmatprep.subr.bf16.mxu0 0
    %251 = vmatpush1.bf16.msra.mxu0 0
    %252 = vmatprep.subr.bf16.mxu0 0
    %253 = vmatpush1.bf16.msra.mxu0 0
    %254 = vmatprep.subr.bf16.mxu0 0
    %255 = vmatpush1.bf16.msra.mxu0 0
    %256 = vmatprep.mubr.bf16.mxu0 0
    %257 = vmatmul.mubr.bf16.gmra.mrb[0].mxu0 %v171
    %v258 = vpop.f32.mrb[0].mxu0
    %v259 = vadd.f32 %v175, %v258
    %v260 = vpop.f32.mrb[0].mxu0
    %v261 = vpop.f32.mrb[0].mxu0
    %v262 = vpop.f32.mrb[0].mxu0
    %263 = vdwg.mxu0
    %v264 = vmax.f32 %v259, 0.0
    %v265 = vpack.c.bf16 %v264, %v264
    %v266 = vlaneseq
    %v267 = vshrl.u32 %v266, 7
    %v268 = vsub.s32 0, %v267
    %v269 = vrot.slane %v108, %v268
    %v286 = vunpack.c.l.b16 %v74
    %v287 = vunpack.c.l.b16 %v75
    %v288 = vunpack.c.l.b16 %v76
    %v289 = vunpack.c.l.b16 %v77
    %v290 = vunpack.c.l.b16 %v78
    %v291 = vunpack.c.l.b16 %v79
    %v292 = vunpack.c.l.b16 %v80
    %v293 = vunpack.c.l.b16 %v81
    %v294 = vunpack.c.l.b16 %v82
    %v295 = vunpack.c.l.b16 %v83
    %v296 = vunpack.c.l.b16 %v84
    %v297 = vunpack.c.l.b16 %v85
    %v298 = vunpack.c.l.b16 %v86
    %v299 = vunpack.c.l.b16 %v87
    %v300 = vunpack.c.l.b16 %v88
    %v301 = vunpack.c.l.b16 %v89
    %v302 = vpack.c.b16 %v287, %v286
    %v303 = vpack.c.b16 %v289, %v288
    %v304 = vpack.c.b16 %v291, %v290
    %v305 = vpack.c.b16 %v293, %v292
    %v306 = vpack.c.b16 %v295, %v294
    %v307 = vpack.c.b16 %v297, %v296
    %v308 = vpack.c.b16 %v299, %v298
    %v309 = vpack.c.b16 %v301, %v300
    %318 = vmatprep.subr.bf16.mxu0 0
    %319 = vmatpush1.bf16.msra.mxu0 %v302
    %320 = vmatprep.subr.bf16.mxu0 0
    %321 = vmatpush1.bf16.msra.mxu0 %v303
    %322 = vmatprep.subr.bf16.mxu0 0
    %323 = vmatpush1.bf16.msra.mxu0 %v304
    %324 = vmatprep.subr.bf16.mxu0 0
    %325 = vmatpush1.bf16.msra.mxu0 %v305
    %326 = vmatprep.subr.bf16.mxu0 0
    %327 = vmatpush1.bf16.msra.mxu0 %v306
    %328 = vmatprep.subr.bf16.mxu0 0
    %329 = vmatpush1.bf16.msra.mxu0 %v307
    %330 = vmatprep.subr.bf16.mxu0 0
    %331 = vmatpush1.bf16.msra.mxu0 %v308
    %332 = vmatprep.subr.bf16.mxu0 0
    %333 = vmatpush1.bf16.msra.mxu0 %v309
    %334 = vmatprep.subr.bf16.mxu0 0
    %335 = vmatpush1.bf16.msra.mxu0 0
    %336 = vmatprep.subr.bf16.mxu0 0
    %337 = vmatpush1.bf16.msra.mxu0 0
    %338 = vmatprep.subr.bf16.mxu0 0
    %339 = vmatpush1.bf16.msra.mxu0 0
    %340 = vmatprep.subr.bf16.mxu0 0
    %341 = vmatpush1.bf16.msra.mxu0 0
    %342 = vmatprep.subr.bf16.mxu0 0
    %343 = vmatpush1.bf16.msra.mxu0 0
    %344 = vmatprep.subr.bf16.mxu0 0
    %345 = vmatpush1.bf16.msra.mxu0 0
    %346 = vmatprep.subr.bf16.mxu0 0
    %347 = vmatpush1.bf16.msra.mxu0 0
    %348 = vmatprep.subr.bf16.mxu0 0
    %349 = vmatpush1.bf16.msra.mxu0 0
    %350 = vmatprep.mubr.bf16.mxu0 0
    %351 = vmatmul.mubr.bf16.gmra.mrb[0].mxu0 %v265
    %v352 = vpop.f32.mrb[0].mxu0
    %v353 = vadd.f32 %v269, %v352
    %v354 = vpop.f32.mrb[0].mxu0
    %v355 = vpop.f32.mrb[0].mxu0
    %v356 = vpop.f32.mrb[0].mxu0
    %357 = vdwg.mxu0
    %v358 = vmax.f32 %v353, 0.0
    %v359 = vpack.c.bf16 %v358, %v358
    %v360 = vlaneseq
    %v361 = vshrl.u32 %v360, 7
    %v362 = vsub.s32 0, %v361
    %v363 = vrot.slane %v109, %v362
    %v380 = vunpack.c.l.b16 %v90
    %v381 = vunpack.c.l.b16 %v91
    %v382 = vunpack.c.l.b16 %v92
    %v383 = vunpack.c.l.b16 %v93
    %v384 = vunpack.c.l.b16 %v94
    %v385 = vunpack.c.l.b16 %v95
    %v386 = vunpack.c.l.b16 %v96
    %v387 = vunpack.c.l.b16 %v97
    %v388 = vunpack.c.l.b16 %v98
    %v389 = vunpack.c.l.b16 %v99
    %v390 = vunpack.c.l.b16 %v100
    %v391 = vunpack.c.l.b16 %v101
    %v392 = vunpack.c.l.b16 %v102
    %v393 = vunpack.c.l.b16 %v103
    %v394 = vunpack.c.l.b16 %v104
    %v395 = vunpack.c.l.b16 %v105
    %v396 = vpack.c.b16 %v381, %v380
    %v397 = vpack.c.b16 %v383, %v382
    %v398 = vpack.c.b16 %v385, %v384
    %v399 = vpack.c.b16 %v387, %v386
    %v400 = vpack.c.b16 %v389, %v388
    %v401 = vpack.c.b16 %v391, %v390
    %v402 = vpack.c.b16 %v393, %v392
    %v403 = vpack.c.b16 %v395, %v394
    %412 = vmatprep.subr.bf16.mxu0 0
    %413 = vmatpush1.bf16.msra.mxu0 %v396
    %414 = vmatprep.subr.bf16.mxu0 0
    %415 = vmatpush1.bf16.msra.mxu0 %v397
    %416 = vmatprep.subr.bf16.mxu0 0
    %417 = vmatpush1.bf16.msra.mxu0 %v398
    %418 = vmatprep.subr.bf16.mxu0 0
    %419 = vmatpush1.bf16.msra.mxu0 %v399
    %420 = vmatprep.subr.bf16.mxu0 0
    %421 = vmatpush1.bf16.msra.mxu0 %v400
    %422 = vmatprep.subr.bf16.mxu0 0
    %423 = vmatpush1.bf16.msra.mxu0 %v401
    %424 = vmatprep.subr.bf16.mxu0 0
    %425 = vmatpush1.bf16.msra.mxu0 %v402
    %426 = vmatprep.subr.bf16.mxu0 0
    %427 = vmatpush1.bf16.msra.mxu0 %v403
    %428 = vmatprep.subr.bf16.mxu0 0
    %429 = vmatpush1.bf16.msra.mxu0 0
    %430 = vmatprep.subr.bf16.mxu0 0
    %431 = vmatpush1.bf16.msra.mxu0 0
    %432 = vmatprep.subr.bf16.mxu0 0
    %433 = vmatpush1.bf16.msra.mxu0 0
    %434 = vmatprep.subr.bf16.mxu0 0
    %435 = vmatpush1.bf16.msra.mxu0 0
    %436 = vmatprep.subr.bf16.mxu0 0
    %437 = vmatpush1.bf16.msra.mxu0 0
    %438 = vmatprep.subr.bf16.mxu0 0
    %439 = vmatpush1.bf16.msra.mxu0 0
    %440 = vmatprep.subr.bf16.mxu0 0
    %441 = vmatpush1.bf16.msra.mxu0 0
    %442 = vmatprep.subr.bf16.mxu0 0
    %443 = vmatpush1.bf16.msra.mxu0 0
    %444 = vmatprep.mubr.bf16.mxu0 0
    %445 = vmatmul.mubr.bf16.gmra.mrb[0].mxu0 %v359
    %v446 = vpop.f32.mrb[0].mxu0
    %v447 = vadd.f32 %v363, %v446
    %v448 = vpop.f32.mrb[0].mxu0
    %v449 = vpop.f32.mrb[0].mxu0
    %v450 = vpop.f32.mrb[0].mxu0
    %451 = vdwg.mxu0
    %v452 = vmul.f32 %v447, 0.5
    %v453 = vtanh.pop %v452
    %v454 = vmul.f32 %v453, 0.5
    %v455 = vadd.f32 %v454, 0.5
    %v456 = vpack.c.bf16 %v455, %v455
    %457 = vst [vmem:[%s3] sm:$0xf] %v456
    // Predicated region
    $region26: #{_policy_forward_packed.1} parent=1 // pred_check
      _
    $region27: #{_policy_forward_packed.1} parent=1 // pred_check_branch
      %459 = sbr.rel (0) target = $region29
    $region28: #{_policy_forward_packed.1} parent=1 // pred_region
      _
    $region29: #{_policy_forward_packed.1} parent=1 // pred_fallthru
      _
    // Predicated region
    $region30: #{_policy_forward_packed.1} parent=1 // pred_check
      _
    $region31: #{_policy_forward_packed.1} parent=1 // pred_check_branch
      %461 = sbr.rel (0) target = $region33
    $region32: #{_policy_forward_packed.1} parent=1 // pred_region
      _
    $region33: #{_policy_forward_packed.1} parent=1 // pred_fallthru
      _
    %462 = vsyncpa [#allocation3], 1
    %463 = vsyncpa [#allocation5], 1

</llo_original>
